<compile_context>
chip_gen: v5e
topology: v5e:2x2
jax: 0.10.0
libtpu: 0.0.40
codegen_flags: <defaults>
</compile_context>

<pallas_src>
import jax
import jax.numpy as jnp
import numpy as np
from jax.experimental import pallas as pl
from jax.experimental.pallas import tpu as pltpu


def _round_up(a, b):
    return (a + b - 1) // b * b


def _lane_tile(n, cap=512):
    """Largest multiple of 128 <= cap that divides n, else the full extent n."""
    if n <= cap:
        return n
    for t in range(cap, 127, -128):
        if n % t == 0:
            return t
    return n


def _upsample_conv_kernel(xe_ref, xo_ref, ge_ref, go_ref, b_ref, o_ref):
    """One (row-block, lane-block) tile of the fused 2x-upsample + 3x3 conv.

    xe_ref: (TM, 2*C*W)  [x_prev | x]  rows (compute dtype) -> even output rows
    xo_ref: (TM, 2*C*W)  [x | x_next]  rows (compute dtype) -> odd  output rows
    ge_ref: (2*C*W, TN)  fused even-row weights
    go_ref: (2*C*W, TN)  fused odd-row  weights
    b_ref : (1, TN)      lane-major bias (f32)
    o_ref : (TM, 2, TN)  [:,0,:] even rows, [:,1,:] odd rows (f32)
    """
    bias = b_ref[...]                                           # (1, TN) f32
    o_ref[:, 0, :] = jnp.dot(xe_ref[...], ge_ref[...],
                             preferred_element_type=jnp.float32) + bias
    o_ref[:, 1, :] = jnp.dot(xo_ref[...], go_ref[...],
                             preferred_element_type=jnp.float32) + bias


def _width_tap_matrices(W):
    """bw[kw, j, ow] = 1 iff padded-upsampled column (ow + kw) reads input col j."""
    bw = np.zeros((3, W, 2 * W), np.float32)
    ow = np.arange(2 * W)
    for kw in range(3):
        col = ow + kw                            # column in the padded upsampled image
        valid = (col >= 1) & (col <= 2 * W)      # 0 and 2W+1 are the zero-pad columns
        src = (col - 1) // 2                     # nearest-upsample source column
        bw[kw, src[valid], ow[valid]] = 1.0
    return bw


def upsample_2d(x, weight=None, bias=None, *, use_conv=True,
                compute_dtype=jnp.bfloat16):
    """Pallas TPU forward of Upsample(channels, use_conv, dims=2, out_channels).

    x: (B, C, H, W) float; weight: (Co, C, 3, 3), bias: (Co,) when use_conv.
    Returns (B, Co, 2H, 2W) float32 (Co == C when use_conv is False).
    """
    B, C, H, W = x.shape
    if not use_conv:
        # nearest upsample == 3x3 conv of the upsampled image with a centre-tap
        # identity kernel, so the same fused kernel covers this path too.
        w_id = np.zeros((C, C, 3, 3), np.float32)
        w_id[np.arange(C), np.arange(C), 1, 1] = 1.0
        weight = w_id
        bias = np.zeros((C,), np.float32)
    weight = jnp.asarray(weight, jnp.float32)     # jnp ops below -> works with traced weights
    bias = jnp.asarray(bias, jnp.float32)
    Co = weight.shape[0]
    CW = C * W
    K = 2 * CW                                    # contraction width ([row_above | row] lanes)
    N = Co * 2 * W                                # output lanes: out-channel major, width minor

    # ---- fused (width upsample + pad + taps + channel mix) weights, built on device ----
    bw = jnp.asarray(_width_tap_matrices(W))                                  # (3, W, 2W)

    def fuse(v):                                                              # v: (Co, C, 3) over kw
        return jnp.einsum("ock,kjw->cjow", v, bw).reshape(CW, N)

    ge = jnp.concatenate([fuse(weight[:, :, 0, :]),                           # kh=0    -> x_prev
                          fuse(weight[:, :, 1, :] + weight[:, :, 2, :])],     # kh=1+2  -> x
                         axis=0).astype(compute_dtype)                        # (K, N)
    go = jnp.concatenate([fuse(weight[:, :, 0, :] + weight[:, :, 1, :]),      # kh=0+1  -> x
                          fuse(weight[:, :, 2, :])],                          # kh=2    -> x_next
                         axis=0).astype(compute_dtype)                        # (K, N)
    bias_lane = jnp.repeat(bias, 2 * W)[None, :]                              # (1, N) f32

    # ---- fold B*H into the matmul M dimension (lane-dense rows, zero boundary rows) ----
    x_rows = jnp.transpose(x.astype(jnp.float32), (0, 2, 1, 3)).reshape(B, H, CW)
    zrow = jnp.zeros((B, 1, CW), jnp.float32)
    x_prev = jnp.concatenate([zrow, x_rows[:, :-1]], axis=1)   # row i-1, zero at image top
    x_next = jnp.concatenate([x_rows[:, 1:], zrow], axis=1)    # row i+1, zero at image bottom
    xe = jnp.concatenate([x_prev, x_rows], axis=-1).reshape(B * H, K)
    xo = jnp.concatenate([x_rows, x_next], axis=-1).reshape(B * H, K)

    M = B * H
    TM = min(256, _round_up(M, 16))               # 16-row align (bf16 sublane packing)
    Mp = _round_up(M, TM)
    if Mp > M:
        pad = jnp.zeros((Mp - M, K), jnp.float32)
        xe = jnp.concatenate([xe, pad], axis=0)
        xo = jnp.concatenate([xo, pad], axis=0)
    xe = xe.astype(compute_dtype)
    xo = xo.astype(compute_dtype)

    TN = _lane_tile(N)                            # tile Co*2W so fused G stays in VMEM budget
    gn, gm = N // TN, Mp // TM

    # grid order: row-blocks innermost so the (K, TN) weight tiles stay resident per j.
    out = pl.pallas_call(
        _upsample_conv_kernel,
        out_shape=jax.ShapeDtypeStruct((Mp, 2, N), jnp.float32),
        grid=(gn, gm),
        in_specs=[
            pl.BlockSpec((TM, K), lambda j, i: (i, 0)),    # [x_prev | x] rows
            pl.BlockSpec((TM, K), lambda j, i: (i, 0)),    # [x | x_next] rows
            pl.BlockSpec((K, TN), lambda j, i: (0, j)),    # fused even-row weights
            pl.BlockSpec((K, TN), lambda j, i: (0, j)),    # fused odd-row weights
            pl.BlockSpec((1, TN), lambda j, i: (0, j)),    # lane-major bias
        ],
        out_specs=pl.BlockSpec((TM, 2, TN), lambda j, i: (i, 0, j)),
        compiler_params=pltpu.CompilerParams(
            dimension_semantics=("parallel", "parallel")),
    )(xe, xo, ge, go, bias_lane)

    # (Mp, 2, N) -> (B, Co, 2H, 2W): even/odd row interleave is a pure reshape;
    # only the NCHW channel transpose remains (forced by the module's NCHW contract).
    out = out[:M].reshape(B, H, 2, Co, 2 * W)
    return jnp.transpose(out, (0, 3, 1, 2, 4)).reshape(B, Co, 2 * H, 2 * W)


def reference_upsample(x, weight, bias, use_conv):
    """Pure-JAX transcription of the PyTorch forward, for verification."""
    up = jnp.repeat(jnp.repeat(x, 2, axis=2), 2, axis=3)
    if not use_conv:
        return up
    y = jax.lax.conv_general_dilated(
        up, jnp.asarray(weight, jnp.float32), window_strides=(1, 1),
        padding=((1, 1), (1, 1)),
        dimension_numbers=("NCHW", "OIHW", "NCHW"),
        precision=jax.lax.Precision.HIGHEST)
    return y + jnp.asarray(bias, jnp.float32)[None, :, None, None]


if __name__ == "__main__":
    B, C, H, W = 2, 4, 16, 16
    Co = 8

    key = jax.random.PRNGKey(0)
    kx, kw, kb = jax.random.split(key, 3)
    x = jax.random.normal(kx, (B, C, H, W), jnp.float32)
    weight = jax.random.normal(kw, (Co, C, 3, 3), jnp.float32) * 0.2
    bias = jax.random.normal(kb, (Co,), jnp.float32) * 0.1

    # Upsample(channels=4, use_conv=True, dims=2, out_channels=8)
    y_ref = reference_upsample(x, weight, bias, True)

    # exact-math check of the fused formulation (f32 operands)
    y_f32 = jax.block_until_ready(
        upsample_2d(x, weight, bias, use_conv=True, compute_dtype=jnp.float32))
    assert y_f32.shape == (B, Co, 2 * H, 2 * W)
    np.testing.assert_allclose(np.asarray(y_f32), np.asarray(y_ref), rtol=1e-4, atol=1e-4)

    # performance configuration (bf16 MXU operands, f32 accumulate)
    y = jax.block_until_ready(upsample_2d(x, weight, bias, use_conv=True))
    assert y.shape == (B, Co, 2 * H, 2 * W)
    np.testing.assert_allclose(np.asarray(y), np.asarray(y_ref), rtol=2e-2, atol=2e-2)

    # Upsample(channels=4, use_conv=False, dims=2): pure nearest upsample
    y2 = jax.block_until_ready(upsample_2d(x, use_conv=False))
    assert y2.shape == (B, C, 2 * H, 2 * W)
    y2_ref = reference_upsample(x, None, None, False)
    np.testing.assert_allclose(np.asarray(y2), np.asarray(y2_ref), rtol=2e-2, atol=2e-2)

    print("KERNEL_OK")
</pallas_src>

<mosaic_0001>
module attributes {stable_mosaic.version = 11 : i64} {
  func.func @_upsample_conv_kernel(%arg0: i32, %arg1: i32, %arg2: memref<32x128xf32, #tpu.memory_space<vmem>>, %arg3: memref<32x128xf32, #tpu.memory_space<vmem>>, %arg4: memref<128x256xf32, #tpu.memory_space<vmem>>, %arg5: memref<128x256xf32, #tpu.memory_space<vmem>>, %arg6: memref<1x256xf32, #tpu.memory_space<vmem>>, %arg7: memref<32x2x256xf32, #tpu.memory_space<vmem>>) attributes {dimension_semantics = [#tpu.dimension_semantics<parallel>, #tpu.dimension_semantics<parallel>], iteration_bounds = array<i64: 1, 1>, scalar_prefetch = 0 : i64, scratch_operands = 0 : i64, tpu.core_type = #tpu.core_type<tc>, window_params = [{transform_indices = @transform_0, window_bounds = array<i64: 32, 128>}, {transform_indices = @transform_1, window_bounds = array<i64: 32, 128>}, {transform_indices = @transform_2, window_bounds = array<i64: 128, 256>}, {transform_indices = @transform_3, window_bounds = array<i64: 128, 256>}, {transform_indices = @transform_4, window_bounds = array<i64: 1, 256>}, {transform_indices = @transform_5, window_bounds = array<i64: 32, 2, 256>}]} {
    %c0 = arith.constant 0 : index
    %c0_0 = arith.constant 0 : index
    %0 = vector.load %arg6[%c0, %c0_0] : memref<1x256xf32, #tpu.memory_space<vmem>>, vector<1x256xf32>
    %c0_1 = arith.constant 0 : index
    %c0_2 = arith.constant 0 : index
    %1 = vector.load %arg2[%c0_1, %c0_2] : memref<32x128xf32, #tpu.memory_space<vmem>>, vector<32x128xf32>
    %c0_3 = arith.constant 0 : index
    %c0_4 = arith.constant 0 : index
    %2 = vector.load %arg4[%c0_3, %c0_4] : memref<128x256xf32, #tpu.memory_space<vmem>>, vector<128x256xf32>
    %cst = arith.constant dense<0.000000e+00> : vector<32x256xf32>
    %3 = tpu.matmul %1, %2, %cst {dimension_numbers = #tpu.dot_dimension_numbers<[1], [0], [0], [1], [0, 0, 1, 1], [], []>} : vector<32x128xf32>, vector<128x256xf32>, vector<32x256xf32> -> vector<32x256xf32>
    %4 = vector.broadcast %0 : vector<1x256xf32> to vector<32x256xf32>
    %5 = arith.addf %3, %4 : vector<32x256xf32>
    %c0_5 = arith.constant 0 : index
    %c0_6 = arith.constant 0 : index
    %c0_7 = arith.constant 0 : index
    %6 = vector.load %arg7[%c0_5, %c0_6, %c0_7] : memref<32x2x256xf32, #tpu.memory_space<vmem>>, vector<32x1x256xf32>
    %7 = vector.shape_cast %6 : vector<32x1x256xf32> to vector<32x256xf32>
    %8 = vector.shape_cast %5 : vector<32x256xf32> to vector<32x1x256xf32>
    tpu.vector_store %arg7[%c0_5, %c0_6, %c0_7], %8 {strides = array<i32>} : memref<32x2x256xf32, #tpu.memory_space<vmem>>, vector<32x1x256xf32>,
    %c0_8 = arith.constant 0 : index
    %c0_9 = arith.constant 0 : index
    %9 = vector.load %arg3[%c0_8, %c0_9] : memref<32x128xf32, #tpu.memory_space<vmem>>, vector<32x128xf32>
    %c0_10 = arith.constant 0 : index
    %c0_11 = arith.constant 0 : index
    %10 = vector.load %arg5[%c0_10, %c0_11] : memref<128x256xf32, #tpu.memory_space<vmem>>, vector<128x256xf32>
    %cst_12 = arith.constant dense<0.000000e+00> : vector<32x256xf32>
    %11 = tpu.matmul %9, %10, %cst_12 {dimension_numbers = #tpu.dot_dimension_numbers<[1], [0], [0], [1], [0, 0, 1, 1], [], []>} : vector<32x128xf32>, vector<128x256xf32>, vector<32x256xf32> -> vector<32x256xf32>
    %12 = vector.broadcast %0 : vector<1x256xf32> to vector<32x256xf32>
    %13 = arith.addf %11, %12 : vector<32x256xf32>
    %c0_13 = arith.constant 0 : index
    %c1 = arith.constant 1 : index
    %c0_14 = arith.constant 0 : index
    %14 = vector.load %arg7[%c0_13, %c1, %c0_14] : memref<32x2x256xf32, #tpu.memory_space<vmem>>, vector<32x1x256xf32>
    %15 = vector.shape_cast %14 : vector<32x1x256xf32> to vector<32x256xf32>
    %16 = vector.shape_cast %13 : vector<32x256xf32> to vector<32x1x256xf32>
    tpu.vector_store %arg7[%c0_13, %c1, %c0_14], %16 {strides = array<i32>} : memref<32x2x256xf32, #tpu.memory_space<vmem>>, vector<32x1x256xf32>,
    return
  }
  func.func @transform_0(%arg0: i32, %arg1: i32) -> (i32, i32) {
    %c0_i32 = arith.constant 0 : i32
    %c0_i32_0 = arith.constant 0 : i32
    return %arg1, %c0_i32 : i32, i32
  }
  func.func @transform_1(%arg0: i32, %arg1: i32) -> (i32, i32) {
    %c0_i32 = arith.constant 0 : i32
    %c0_i32_0 = arith.constant 0 : i32
    return %arg1, %c0_i32 : i32, i32
  }
  func.func @transform_2(%arg0: i32, %arg1: i32) -> (i32, i32) {
    %c0_i32 = arith.constant 0 : i32
    %c0_i32_0 = arith.constant 0 : i32
    return %c0_i32, %arg0 : i32, i32
  }
  func.func @transform_3(%arg0: i32, %arg1: i32) -> (i32, i32) {
    %c0_i32 = arith.constant 0 : i32
    %c0_i32_0 = arith.constant 0 : i32
    return %c0_i32, %arg0 : i32, i32
  }
  func.func @transform_4(%arg0: i32, %arg1: i32) -> (i32, i32) {
    %c0_i32 = arith.constant 0 : i32
    %c0_i32_0 = arith.constant 0 : i32
    return %c0_i32, %arg0 : i32, i32
  }
  func.func @transform_5(%arg0: i32, %arg1: i32) -> (i32, i32, i32) {
    %c0_i32 = arith.constant 0 : i32
    %c0_i32_0 = arith.constant 0 : i32
    return %arg1, %c0_i32, %arg0 : i32, i32, i32
  }
}

</mosaic_0001>

<llo_original>
// kernel: tpu_custom_call.1
$region0: #{tpu_custom_call.1}
  #allocation0 [shape = 'u32[]', space=smem, size = 0x4, offset = 0x4, fixed_abs, tag = 'smem constant byte address 0x4 - core index']
  #allocation1 [shape = 'u32[72,128]{1,0:T(1,128)}', space=vmem, size = 0x9000, scoped, tag = 'internal scratch']
  %s0 = inlined_call_operand.hbm [shape: f32[32,128], index: 0, kind: input, shape index: {}]
  %s1 = inlined_call_operand.hbm [shape: f32[32,128], index: 1, kind: input, shape index: {}]
  %s2 = inlined_call_operand.hbm [shape: f32[128,256], index: 2, kind: input, shape index: {}]
  %s3 = inlined_call_operand.hbm [shape: f32[128,256], index: 3, kind: input, shape index: {}]
  %s4 = inlined_call_operand.vmem [shape: f32[1,256], index: 4, kind: input, shape index: {}]
  %s5 = inlined_call_operand.hbm [shape: f32[32,2,256], index: 5, kind: output, shape index: {}]
  %s6 = sld [smem:[#allocation0]]
  $region46: #{tpu_custom_call.1} parent=0
    _
  %s8 = ssub.s32 1, %s6
  %s9 = scalar_select 0, %s8, %s6
  $region1: #{tpu_custom_call.1} parent=0
    #allocation2 [shape = 'u8[16384]{0}', space=vmem, size = 0x4000, scoped, tag = 'input window, operand 0, single buffered']
    #allocation3 [shape = 's32[1]{0}', space=sflag, size = 0x4, scoped, tag = 'scoped memory for tpu_custom_call.1']
    #allocation4 [shape = 's32[1]{0}', space=sflag, size = 0x4, scoped, tag = 'scoped memory for tpu_custom_call.1']
    #allocation5 [shape = 'u8[16384]{0}', space=vmem, size = 0x4000, scoped, tag = 'input window, operand 1, single buffered']
    #allocation6 [shape = 's32[1]{0}', space=sflag, size = 0x4, scoped, tag = 'scoped memory for tpu_custom_call.1']
    #allocation7 [shape = 'u8[131072]{0}', space=vmem, size = 0x20000, scoped, tag = 'input window, operand 2, single buffered']
    #allocation8 [shape = 'u8[131072]{0}', space=vmem, size = 0x20000, scoped, tag = 'input window, operand 3, single buffered']
    #allocation9 [shape = 's32[1]{0}', space=sflag, size = 0x4, scoped, tag = 'scoped memory for tpu_custom_call.1']
    #allocation10 [shape = 'u8[65536]{0}', space=vmem, size = 0x10000, scoped, tag = 'output window, operand 0, single buffered']
    %10 = vsyncpa [#allocation3], 0
    %11 = vsyncpa [#allocation6], 0
    %12 = vsyncpa [#allocation9], 0
    %13 = vsyncpa [#allocation4], 0
    // Predicated region
    $region2: #{tpu_custom_call.1} parent=1 // pred_check
      _
    $region3: #{tpu_custom_call.1} parent=1 // pred_check_branch
      %15 = sbr.rel (0) target = $region5
    $region4: #{tpu_custom_call.1} parent=1 // pred_region
      %17 = vsyncadd [#allocation3], 0
      %s18 = sshll.u32 %s0, 4
      %s19 = int_to_ptr.hbm [resolvable:$true] %s18
      %s20 = sshll.u32 [#allocation2], 4
      %s21 = int_to_ptr.vmem [resolvable:$true] %s20
      %26 = dma.hbm_to_vmem [thread:$0]  %s19, 512, %s21, [#allocation3], 128, 128, 8
    $region5: #{tpu_custom_call.1} parent=1 // pred_fallthru
      _
    // Predicated region
    $region6: #{tpu_custom_call.1} parent=1 // pred_check
      _
    $region7: #{tpu_custom_call.1} parent=1 // pred_check_branch
      %28 = sbr.rel (0) target = $region9
    $region8: #{tpu_custom_call.1} parent=1 // pred_region
      %30 = vsyncadd [#allocation6], 0
      %s31 = sshll.u32 %s1, 4
      %s32 = int_to_ptr.hbm [resolvable:$true] %s31
      %s33 = sshll.u32 [#allocation5], 4
      %s34 = int_to_ptr.vmem [resolvable:$true] %s33
      %39 = dma.hbm_to_vmem [thread:$0]  %s32, 512, %s34, [#allocation6], 128, 128, 8
    $region9: #{tpu_custom_call.1} parent=1 // pred_fallthru
      _
    // Predicated region
    $region10: #{tpu_custom_call.1} parent=1 // pred_check
      _
    $region11: #{tpu_custom_call.1} parent=1 // pred_check_branch
      %41 = sbr.rel (0) target = $region13
    $region12: #{tpu_custom_call.1} parent=1 // pred_region
      %43 = vsyncadd [#allocation6], 0
      %s44 = sshll.u32 %s2, 4
      %s45 = int_to_ptr.hbm [resolvable:$true] %s44
      %s46 = sshll.u32 [#allocation7], 4
      %s47 = int_to_ptr.vmem [resolvable:$true] %s46
      %52 = dma.hbm_to_vmem [thread:$0]  %s45, 4096, %s47, [#allocation6], 256, 256, 16
    $region13: #{tpu_custom_call.1} parent=1 // pred_fallthru
      _
    // Predicated region
    $region14: #{tpu_custom_call.1} parent=1 // pred_check
      _
    $region15: #{tpu_custom_call.1} parent=1 // pred_check_branch
      %54 = sbr.rel (0) target = $region17
    $region16: #{tpu_custom_call.1} parent=1 // pred_region
      %56 = vsyncadd [#allocation9], 0
      %s57 = sshll.u32 %s3, 4
      %s58 = int_to_ptr.hbm [resolvable:$true] %s57
      %s59 = sshll.u32 [#allocation8], 4
      %s60 = int_to_ptr.vmem [resolvable:$true] %s59
      %65 = dma.hbm_to_vmem [thread:$0]  %s58, 4096, %s60, [#allocation9], 256, 256, 16
    $region17: #{tpu_custom_call.1} parent=1 // pred_fallthru
      _
    // Predicated region
    $region18: #{tpu_custom_call.1} parent=1 // pred_check
      _
    $region19: #{tpu_custom_call.1} parent=1 // pred_check_branch
      %67 = sbr.rel (0) target = $region21
    $region20: #{tpu_custom_call.1} parent=1 // pred_region
      _
    $region21: #{tpu_custom_call.1} parent=1 // pred_fallthru
      _
    // Predicated region
    $region22: #{tpu_custom_call.1} parent=1 // pred_check
      _
    $region23: #{tpu_custom_call.1} parent=1 // pred_check_branch
      %69 = sbr.rel (0) target = $region25
    $region24: #{tpu_custom_call.1} parent=1 // pred_region
      %71 = dma.done [#allocation3], 512
    $region25: #{tpu_custom_call.1} parent=1 // pred_fallthru
      _
    // Predicated region
    $region26: #{tpu_custom_call.1} parent=1 // pred_check
      _
    $region27: #{tpu_custom_call.1} parent=1 // pred_check_branch
      %73 = sbr.rel (0) target = $region29
    $region28: #{tpu_custom_call.1} parent=1 // pred_region
      %75 = dma.done [#allocation6], 512
    $region29: #{tpu_custom_call.1} parent=1 // pred_fallthru
      _
    // Predicated region
    $region30: #{tpu_custom_call.1} parent=1 // pred_check
      _
    $region31: #{tpu_custom_call.1} parent=1 // pred_check_branch
      %77 = sbr.rel (0) target = $region33
    $region32: #{tpu_custom_call.1} parent=1 // pred_region
      %79 = dma.done [#allocation6], 4096
    $region33: #{tpu_custom_call.1} parent=1 // pred_fallthru
      _
    // Predicated region
    $region34: #{tpu_custom_call.1} parent=1 // pred_check
      _
    $region35: #{tpu_custom_call.1} parent=1 // pred_check_branch
      %81 = sbr.rel (0) target = $region37
    $region36: #{tpu_custom_call.1} parent=1 // pred_region
      %83 = dma.done [#allocation9], 4096
    $region37: #{tpu_custom_call.1} parent=1 // pred_fallthru
      _
    %v84 = vld [vmem:[%s4] sm:$0x3]
    %v85 = vld [vmem:[#allocation2] sm:$0xff]
    %v86 = vld [vmem:[#allocation2 + $0x8] sm:$0xff]
    %v87 = vld [vmem:[#allocation2 + $0x10] sm:$0xff]
    %v88 = vld [vmem:[#allocation2 + $0x18] sm:$0xff]
    %v89 = vld [vmem:[#allocation7] sm:$0xff]
    %v90 = vld [vmem:[#allocation7 + $0x8] sm:$0xff]
    %v91 = vld [vmem:[#allocation7 + $0x10] sm:$0xff]
    %v92 = vld [vmem:[#allocation7 + $0x18] sm:$0xff]
    %v93 = vld [vmem:[#allocation7 + $0x20] sm:$0xff]
    %v94 = vld [vmem:[#allocation7 + $0x28] sm:$0xff]
    %v95 = vld [vmem:[#allocation7 + $0x30] sm:$0xff]
    %v96 = vld [vmem:[#allocation7 + $0x38] sm:$0xff]
    %v97 = vld [vmem:[#allocation7 + $0x40] sm:$0xff]
    %v98 = vld [vmem:[#allocation7 + $0x48] sm:$0xff]
    %v99 = vld [vmem:[#allocation7 + $0x50] sm:$0xff]
    %v100 = vld [vmem:[#allocation7 + $0x58] sm:$0xff]
    %v101 = vld [vmem:[#allocation7 + $0x60] sm:$0xff]
    %v102 = vld [vmem:[#allocation7 + $0x68] sm:$0xff]
    %v103 = vld [vmem:[#allocation7 + $0x70] sm:$0xff]
    %v104 = vld [vmem:[#allocation7 + $0x78] sm:$0xff]
    %v105 = vld [vmem:[#allocation7 + $0x80] sm:$0xff]
    %v106 = vld [vmem:[#allocation7 + $0x88] sm:$0xff]
    %v107 = vld [vmem:[#allocation7 + $0x90] sm:$0xff]
    %v108 = vld [vmem:[#allocation7 + $0x98] sm:$0xff]
    %v109 = vld [vmem:[#allocation7 + $0xa0] sm:$0xff]
    %v110 = vld [vmem:[#allocation7 + $0xa8] sm:$0xff]
    %v111 = vld [vmem:[#allocation7 + $0xb0] sm:$0xff]
    %v112 = vld [vmem:[#allocation7 + $0xb8] sm:$0xff]
    %v113 = vld [vmem:[#allocation7 + $0xc0] sm:$0xff]
    %v114 = vld [vmem:[#allocation7 + $0xc8] sm:$0xff]
    %v115 = vld [vmem:[#allocation7 + $0xd0] sm:$0xff]
    %v116 = vld [vmem:[#allocation7 + $0xd8] sm:$0xff]
    %v117 = vld [vmem:[#allocation7 + $0xe0] sm:$0xff]
    %v118 = vld [vmem:[#allocation7 + $0xe8] sm:$0xff]
    %v119 = vld [vmem:[#allocation7 + $0xf0] sm:$0xff]
    %v120 = vld [vmem:[#allocation7 + $0xf8] sm:$0xff]
    %v122 = vperm.slane %v84, 0
    %v123 = vperm.slane %v84, 1
    %126 = vmatpush.msra.mxu0 %v119
    %127 = vmatpush.msra.mxu0 %v117
    %128 = vmatpush.msra.mxu0 %v115
    %129 = vmatpush.msra.mxu0 %v113
    %130 = vmatpush.msra.mxu0 %v111
    %131 = vmatpush.msra.mxu0 %v109
    %132 = vmatpush.msra.mxu0 %v107
    %133 = vmatpush.msra.mxu0 %v105
    %134 = vmatpush.msra.mxu0 %v103
    %135 = vmatpush.msra.mxu0 %v101
    %136 = vmatpush.msra.mxu0 %v99
    %137 = vmatpush.msra.mxu0 %v97
    %138 = vmatpush.msra.mxu0 %v95
    %139 = vmatpush.msra.mxu0 %v93
    %140 = vmatpush.msra.mxu0 %v91
    %141 = vmatpush.msra.mxu0 %v89
    %142 = vmatmul.f32.gmra.mxu0 %v85
    %v143 = vpop.f32.mrf.mxu0
    %v144 = vadd.f32 %v122, %v143
    %145 = vmatmul.f32.gmra.mxu0 %v86
    %v146 = vpop.f32.mrf.mxu0
    %v147 = vadd.f32 %v122, %v146
    %148 = vmatmul.f32.gmra.mxu0 %v87
    %v149 = vpop.f32.mrf.mxu0
    %v150 = vadd.f32 %v122, %v149
    %151 = vmatmul.f32.gmra.mxu0 %v88
    %v152 = vpop.f32.mrf.mxu0
    %v153 = vadd.f32 %v122, %v152
    %154 = vdwg.mxu0
    %155 = vmatpush.msra.mxu0 %v120
    %156 = vmatpush.msra.mxu0 %v118
    %157 = vmatpush.msra.mxu0 %v116
    %158 = vmatpush.msra.mxu0 %v114
    %159 = vmatpush.msra.mxu0 %v112
    %160 = vmatpush.msra.mxu0 %v110
    %161 = vmatpush.msra.mxu0 %v108
    %162 = vmatpush.msra.mxu0 %v106
    %163 = vmatpush.msra.mxu0 %v104
    %164 = vmatpush.msra.mxu0 %v102
    %165 = vmatpush.msra.mxu0 %v100
    %166 = vmatpush.msra.mxu0 %v98
    %167 = vmatpush.msra.mxu0 %v96
    %168 = vmatpush.msra.mxu0 %v94
    %169 = vmatpush.msra.mxu0 %v92
    %170 = vmatpush.msra.mxu0 %v90
    %171 = vmatmul.f32.gmra.mxu0 %v85
    %v172 = vpop.f32.mrf.mxu0
    %v173 = vadd.f32 %v123, %v172
    %174 = vmatmul.f32.gmra.mxu0 %v86
    %v175 = vpop.f32.mrf.mxu0
    %v176 = vadd.f32 %v123, %v175
    %177 = vmatmul.f32.gmra.mxu0 %v87
    %v178 = vpop.f32.mrf.mxu0
    %v179 = vadd.f32 %v123, %v178
    %180 = vmatmul.f32.gmra.mxu0 %v88
    %v181 = vpop.f32.mrf.mxu0
    %v182 = vadd.f32 %v123, %v181
    %183 = vdwg.mxu0
    %v192 = vrot.slane %v173, 7
    %v193 = vrot.slane %v176, 7
    %v194 = vrot.slane %v179, 7
    %v195 = vrot.slane %v182, 7
    %vm196 = vcmask 1040384
    %v197 = vsel %vm196, %v144, %v192
    %vm198 = vcmask 1041409
    %v199 = vsel %vm198, %v144, %v192
    %v200 = vrot.slane %v199, 1
    %vm201 = vcmask 1042434
    %v202 = vsel %vm201, %v144, %v192
    %v203 = vrot.slane %v202, 2
    %vm204 = vcmask 1043459
    %v205 = vsel %vm204, %v144, %v192
    %v206 = vrot.slane %v205, 3
    %vm207 = vcmask 1044484
    %v208 = vsel %vm207, %v144, %v192
    %v209 = vrot.slane %v208, 4
    %vm210 = vcmask 1045509
    %v211 = vsel %vm210, %v144, %v192
    %v212 = vrot.slane %v211, 5
    %vm213 = vcmask 1046534
    %v214 = vsel %vm213, %v144, %v192
    %v215 = vrot.slane %v214, 6
    %vm216 = vcmask 1046528
    %v217 = vsel %vm216, %v192, %v144
    %v218 = vrot.slane %v217, 7
    %v219 = vsel %vm196, %v147, %v193
    %v220 = vsel %vm198, %v147, %v193
    %v221 = vrot.slane %v220, 1
    %v222 = vsel %vm201, %v147, %v193
    %v223 = vrot.slane %v222, 2
    %v224 = vsel %vm204, %v147, %v193
    %v225 = vrot.slane %v224, 3
    %v226 = vsel %vm207, %v147, %v193
    %v227 = vrot.slane %v226, 4
    %v228 = vsel %vm210, %v147, %v193
    %v229 = vrot.slane %v228, 5
    %v230 = vsel %vm213, %v147, %v193
    %v231 = vrot.slane %v230, 6
    %v232 = vsel %vm216, %v193, %v147
    %v233 = vrot.slane %v232, 7
    %v234 = vsel %vm196, %v150, %v194
    %v235 = vsel %vm198, %v150, %v194
    %v236 = vrot.slane %v235, 1
    %v237 = vsel %vm201, %v150, %v194
    %v238 = vrot.slane %v237, 2
    %v239 = vsel %vm204, %v150, %v194
    %v240 = vrot.slane %v239, 3
    %v241 = vsel %vm207, %v150, %v194
    %v242 = vrot.slane %v241, 4
    %v243 = vsel %vm210, %v150, %v194
    %v244 = vrot.slane %v243, 5
    %v245 = vsel %vm213, %v150, %v194
    %v246 = vrot.slane %v245, 6
    %v247 = vsel %vm216, %v194, %v150
    %v248 = vrot.slane %v247, 7
    %v249 = vsel %vm196, %v153, %v195
    %v250 = vsel %vm198, %v153, %v195
    %v251 = vrot.slane %v250, 1
    %v252 = vsel %vm201, %v153, %v195
    %v253 = vrot.slane %v252, 2
    %v254 = vsel %vm204, %v153, %v195
    %v255 = vrot.slane %v254, 3
    %v256 = vsel %vm207, %v153, %v195
    %v257 = vrot.slane %v256, 4
    %v258 = vsel %vm210, %v153, %v195
    %v259 = vrot.slane %v258, 5
    %v260 = vsel %vm213, %v153, %v195
    %v261 = vrot.slane %v260, 6
    %v262 = vsel %vm216, %v195, %v153
    %v263 = vrot.slane %v262, 7
    %v296 = vlaneseq
    %vm297 = vcmp.ge.s32.totalorder %v296, 0
    %vm298 = vcmp.lt.s32.totalorder %v296, 256
    %vm299 = vmand %vm297, %vm298
    %300 = vst.msk [vmem:[#allocation10] ss:$2 sm:$0x3] %vm299, %v197
    %s301 = scalar_lea.vmem [#allocation10], 4
    %302 = vst.msk [vmem:[%s301] ss:$2 sm:$0x3] %vm299, %v200
    %s303 = scalar_lea.vmem [#allocation10], 8
    %304 = vst.msk [vmem:[%s303] ss:$2 sm:$0x3] %vm299, %v203
    %s305 = scalar_lea.vmem [#allocation10], 12
    %306 = vst.msk [vmem:[%s305] ss:$2 sm:$0x3] %vm299, %v206
    %s307 = scalar_lea.vmem [#allocation10], 16
    %308 = vst.msk [vmem:[%s307] ss:$2 sm:$0x3] %vm299, %v209
    %s309 = scalar_lea.vmem [#allocation10], 20
    %310 = vst.msk [vmem:[%s309] ss:$2 sm:$0x3] %vm299, %v212
    %s311 = scalar_lea.vmem [#allocation10], 24
    %312 = vst.msk [vmem:[%s311] ss:$2 sm:$0x3] %vm299, %v215
    %s313 = scalar_lea.vmem [#allocation10], 28
    %314 = vst.msk [vmem:[%s313] ss:$2 sm:$0x3] %vm299, %v218
    %s315 = scalar_lea.vmem [#allocation10], 32
    %316 = vst.msk [vmem:[%s315] ss:$2 sm:$0x3] %vm299, %v219
    %s317 = scalar_lea.vmem [#allocation10], 36
    %318 = vst.msk [vmem:[%s317] ss:$2 sm:$0x3] %vm299, %v221
    %s319 = scalar_lea.vmem [#allocation10], 40
    %320 = vst.msk [vmem:[%s319] ss:$2 sm:$0x3] %vm299, %v223
    %s321 = scalar_lea.vmem [#allocation10], 44
    %322 = vst.msk [vmem:[%s321] ss:$2 sm:$0x3] %vm299, %v225
    %s323 = scalar_lea.vmem [#allocation10], 48
    %324 = vst.msk [vmem:[%s323] ss:$2 sm:$0x3] %vm299, %v227
    %s325 = scalar_lea.vmem [#allocation10], 52
    %326 = vst.msk [vmem:[%s325] ss:$2 sm:$0x3] %vm299, %v229
    %s327 = scalar_lea.vmem [#allocation10], 56
    %328 = vst.msk [vmem:[%s327] ss:$2 sm:$0x3] %vm299, %v231
    %s329 = scalar_lea.vmem [#allocation10], 60
    %330 = vst.msk [vmem:[%s329] ss:$2 sm:$0x3] %vm299, %v233
    %s331 = scalar_lea.vmem [#allocation10], 64
    %332 = vst.msk [vmem:[%s331] ss:$2 sm:$0x3] %vm299, %v234
    %s333 = scalar_lea.vmem [#allocation10], 68
    %334 = vst.msk [vmem:[%s333] ss:$2 sm:$0x3] %vm299, %v236
    %s335 = scalar_lea.vmem [#allocation10], 72
    %336 = vst.msk [vmem:[%s335] ss:$2 sm:$0x3] %vm299, %v238
    %s337 = scalar_lea.vmem [#allocation10], 76
    %338 = vst.msk [vmem:[%s337] ss:$2 sm:$0x3] %vm299, %v240
    %s339 = scalar_lea.vmem [#allocation10], 80
    %340 = vst.msk [vmem:[%s339] ss:$2 sm:$0x3] %vm299, %v242
    %s341 = scalar_lea.vmem [#allocation10], 84
    %342 = vst.msk [vmem:[%s341] ss:$2 sm:$0x3] %vm299, %v244
    %s343 = scalar_lea.vmem [#allocation10], 88
    %344 = vst.msk [vmem:[%s343] ss:$2 sm:$0x3] %vm299, %v246
    %s345 = scalar_lea.vmem [#allocation10], 92
    %346 = vst.msk [vmem:[%s345] ss:$2 sm:$0x3] %vm299, %v248
    %s347 = scalar_lea.vmem [#allocation10], 96
    %348 = vst.msk [vmem:[%s347] ss:$2 sm:$0x3] %vm299, %v249
    %s349 = scalar_lea.vmem [#allocation10], 100
    %350 = vst.msk [vmem:[%s349] ss:$2 sm:$0x3] %vm299, %v251
    %s351 = scalar_lea.vmem [#allocation10], 104
    %352 = vst.msk [vmem:[%s351] ss:$2 sm:$0x3] %vm299, %v253
    %s353 = scalar_lea.vmem [#allocation10], 108
    %354 = vst.msk [vmem:[%s353] ss:$2 sm:$0x3] %vm299, %v255
    %s355 = scalar_lea.vmem [#allocation10], 112
    %356 = vst.msk [vmem:[%s355] ss:$2 sm:$0x3] %vm299, %v257
    %s357 = scalar_lea.vmem [#allocation10], 116
    %358 = vst.msk [vmem:[%s357] ss:$2 sm:$0x3] %vm299, %v259
    %s359 = scalar_lea.vmem [#allocation10], 120
    %360 = vst.msk [vmem:[%s359] ss:$2 sm:$0x3] %vm299, %v261
    %s361 = scalar_lea.vmem [#allocation10], 124
    %362 = vst.msk [vmem:[%s361] ss:$2 sm:$0x3] %vm299, %v263
    %v363 = vld [vmem:[#allocation5] sm:$0xff]
    %v364 = vld [vmem:[#allocation5 + $0x8] sm:$0xff]
    %v365 = vld [vmem:[#allocation5 + $0x10] sm:$0xff]
    %v366 = vld [vmem:[#allocation5 + $0x18] sm:$0xff]
    %v367 = vld [vmem:[#allocation8] sm:$0xff]
    %v368 = vld [vmem:[#allocation8 + $0x8] sm:$0xff]
    %v369 = vld [vmem:[#allocation8 + $0x10] sm:$0xff]
    %v370 = vld [vmem:[#allocation8 + $0x18] sm:$0xff]
    %v371 = vld [vmem:[#allocation8 + $0x20] sm:$0xff]
    %v372 = vld [vmem:[#allocation8 + $0x28] sm:$0xff]
    %v373 = vld [vmem:[#allocation8 + $0x30] sm:$0xff]
    %v374 = vld [vmem:[#allocation8 + $0x38] sm:$0xff]
    %v375 = vld [vmem:[#allocation8 + $0x40] sm:$0xff]
    %v376 = vld [vmem:[#allocation8 + $0x48] sm:$0xff]
    %v377 = vld [vmem:[#allocation8 + $0x50] sm:$0xff]
    %v378 = vld [vmem:[#allocation8 + $0x58] sm:$0xff]
    %v379 = vld [vmem:[#allocation8 + $0x60] sm:$0xff]
    %v380 = vld [vmem:[#allocation8 + $0x68] sm:$0xff]
    %v381 = vld [vmem:[#allocation8 + $0x70] sm:$0xff]
    %v382 = vld [vmem:[#allocation8 + $0x78] sm:$0xff]
    %v383 = vld [vmem:[#allocation8 + $0x80] sm:$0xff]
    %v384 = vld [vmem:[#allocation8 + $0x88] sm:$0xff]
    %v385 = vld [vmem:[#allocation8 + $0x90] sm:$0xff]
    %v386 = vld [vmem:[#allocation8 + $0x98] sm:$0xff]
    %v387 = vld [vmem:[#allocation8 + $0xa0] sm:$0xff]
    %v388 = vld [vmem:[#allocation8 + $0xa8] sm:$0xff]
    %v389 = vld [vmem:[#allocation8 + $0xb0] sm:$0xff]
    %v390 = vld [vmem:[#allocation8 + $0xb8] sm:$0xff]
    %v391 = vld [vmem:[#allocation8 + $0xc0] sm:$0xff]
    %v392 = vld [vmem:[#allocation8 + $0xc8] sm:$0xff]
    %v393 = vld [vmem:[#allocation8 + $0xd0] sm:$0xff]
    %v394 = vld [vmem:[#allocation8 + $0xd8] sm:$0xff]
    %v395 = vld [vmem:[#allocation8 + $0xe0] sm:$0xff]
    %v396 = vld [vmem:[#allocation8 + $0xe8] sm:$0xff]
    %v397 = vld [vmem:[#allocation8 + $0xf0] sm:$0xff]
    %v398 = vld [vmem:[#allocation8 + $0xf8] sm:$0xff]
    %399 = vmatpush.msra.mxu0 %v397
    %400 = vmatpush.msra.mxu0 %v395
    %401 = vmatpush.msra.mxu0 %v393
    %402 = vmatpush.msra.mxu0 %v391
    %403 = vmatpush.msra.mxu0 %v389
    %404 = vmatpush.msra.mxu0 %v387
    %405 = vmatpush.msra.mxu0 %v385
    %406 = vmatpush.msra.mxu0 %v383
    %407 = vmatpush.msra.mxu0 %v381
    %408 = vmatpush.msra.mxu0 %v379
    %409 = vmatpush.msra.mxu0 %v377
    %410 = vmatpush.msra.mxu0 %v375
    %411 = vmatpush.msra.mxu0 %v373
    %412 = vmatpush.msra.mxu0 %v371
    %413 = vmatpush.msra.mxu0 %v369
    %414 = vmatpush.msra.mxu0 %v367
    %415 = vmatmul.f32.gmra.mxu0 %v363
    %v416 = vpop.f32.mrf.mxu0
    %v417 = vadd.f32 %v122, %v416
    %418 = vmatmul.f32.gmra.mxu0 %v364
    %v419 = vpop.f32.mrf.mxu0
    %v420 = vadd.f32 %v122, %v419
    %421 = vmatmul.f32.gmra.mxu0 %v365
    %v422 = vpop.f32.mrf.mxu0
    %v423 = vadd.f32 %v122, %v422
    %424 = vmatmul.f32.gmra.mxu0 %v366
    %v425 = vpop.f32.mrf.mxu0
    %v426 = vadd.f32 %v122, %v425
    %427 = vdwg.mxu0
    %428 = vmatpush.msra.mxu0 %v398
    %429 = vmatpush.msra.mxu0 %v396
    %430 = vmatpush.msra.mxu0 %v394
    %431 = vmatpush.msra.mxu0 %v392
    %432 = vmatpush.msra.mxu0 %v390
    %433 = vmatpush.msra.mxu0 %v388
    %434 = vmatpush.msra.mxu0 %v386
    %435 = vmatpush.msra.mxu0 %v384
    %436 = vmatpush.msra.mxu0 %v382
    %437 = vmatpush.msra.mxu0 %v380
    %438 = vmatpush.msra.mxu0 %v378
    %439 = vmatpush.msra.mxu0 %v376
    %440 = vmatpush.msra.mxu0 %v374
    %441 = vmatpush.msra.mxu0 %v372
    %442 = vmatpush.msra.mxu0 %v370
    %443 = vmatpush.msra.mxu0 %v368
    %444 = vmatmul.f32.gmra.mxu0 %v363
    %v445 = vpop.f32.mrf.mxu0
    %v446 = vadd.f32 %v123, %v445
    %447 = vmatmul.f32.gmra.mxu0 %v364
    %v448 = vpop.f32.mrf.mxu0
    %v449 = vadd.f32 %v123, %v448
    %450 = vmatmul.f32.gmra.mxu0 %v365
    %v451 = vpop.f32.mrf.mxu0
    %v452 = vadd.f32 %v123, %v451
    %453 = vmatmul.f32.gmra.mxu0 %v366
    %v454 = vpop.f32.mrf.mxu0
    %v455 = vadd.f32 %v123, %v454
    %456 = vdwg.mxu0
    %v465 = vrot.slane %v446, 7
    %v466 = vrot.slane %v449, 7
    %v467 = vrot.slane %v452, 7
    %v468 = vrot.slane %v455, 7
    %v469 = vsel %vm196, %v417, %v465
    %v470 = vsel %vm198, %v417, %v465
    %v471 = vrot.slane %v470, 1
    %v472 = vsel %vm201, %v417, %v465
    %v473 = vrot.slane %v472, 2
    %v474 = vsel %vm204, %v417, %v465
    %v475 = vrot.slane %v474, 3
    %v476 = vsel %vm207, %v417, %v465
    %v477 = vrot.slane %v476, 4
    %v478 = vsel %vm210, %v417, %v465
    %v479 = vrot.slane %v478, 5
    %v480 = vsel %vm213, %v417, %v465
    %v481 = vrot.slane %v480, 6
    %v482 = vsel %vm216, %v465, %v417
    %v483 = vrot.slane %v482, 7
    %v484 = vsel %vm196, %v420, %v466
    %v485 = vsel %vm198, %v420, %v466
    %v486 = vrot.slane %v485, 1
    %v487 = vsel %vm201, %v420, %v466
    %v488 = vrot.slane %v487, 2
    %v489 = vsel %vm204, %v420, %v466
    %v490 = vrot.slane %v489, 3
    %v491 = vsel %vm207, %v420, %v466
    %v492 = vrot.slane %v491, 4
    %v493 = vsel %vm210, %v420, %v466
    %v494 = vrot.slane %v493, 5
    %v495 = vsel %vm213, %v420, %v466
    %v496 = vrot.slane %v495, 6
    %v497 = vsel %vm216, %v466, %v420
    %v498 = vrot.slane %v497, 7
    %v499 = vsel %vm196, %v423, %v467
    %v500 = vsel %vm198, %v423, %v467
    %v501 = vrot.slane %v500, 1
    %v502 = vsel %vm201, %v423, %v467
    %v503 = vrot.slane %v502, 2
    %v504 = vsel %vm204, %v423, %v467
    %v505 = vrot.slane %v504, 3
    %v506 = vsel %vm207, %v423, %v467
    %v507 = vrot.slane %v506, 4
    %v508 = vsel %vm210, %v423, %v467
    %v509 = vrot.slane %v508, 5
    %v510 = vsel %vm213, %v423, %v467
    %v511 = vrot.slane %v510, 6
    %v512 = vsel %vm216, %v467, %v423
    %v513 = vrot.slane %v512, 7
    %v514 = vsel %vm196, %v426, %v468
    %v515 = vsel %vm198, %v426, %v468
    %v516 = vrot.slane %v515, 1
    %v517 = vsel %vm201, %v426, %v468
    %v518 = vrot.slane %v517, 2
    %v519 = vsel %vm204, %v426, %v468
    %v520 = vrot.slane %v519, 3
    %v521 = vsel %vm207, %v426, %v468
    %v522 = vrot.slane %v521, 4
    %v523 = vsel %vm210, %v426, %v468
    %v524 = vrot.slane %v523, 5
    %v525 = vsel %vm213, %v426, %v468
    %v526 = vrot.slane %v525, 6
    %v527 = vsel %vm216, %v468, %v426
    %v528 = vrot.slane %v527, 7
    %s561 = scalar_lea.vmem [#allocation10], 1
    %562 = vst.msk [vmem:[%s561] ss:$2 sm:$0x3] %vm299, %v469
    %s563 = scalar_lea.vmem [#allocation10], 5
    %564 = vst.msk [vmem:[%s563] ss:$2 sm:$0x3] %vm299, %v471
    %s565 = scalar_lea.vmem [#allocation10], 9
    %566 = vst.msk [vmem:[%s565] ss:$2 sm:$0x3] %vm299, %v473
    %s567 = scalar_lea.vmem [#allocation10], 13
    %568 = vst.msk [vmem:[%s567] ss:$2 sm:$0x3] %vm299, %v475
    %s569 = scalar_lea.vmem [#allocation10], 17
    %570 = vst.msk [vmem:[%s569] ss:$2 sm:$0x3] %vm299, %v477
    %s571 = scalar_lea.vmem [#allocation10], 21
    %572 = vst.msk [vmem:[%s571] ss:$2 sm:$0x3] %vm299, %v479
    %s573 = scalar_lea.vmem [#allocation10], 25
    %574 = vst.msk [vmem:[%s573] ss:$2 sm:$0x3] %vm299, %v481
    %s575 = scalar_lea.vmem [#allocation10], 29
    %576 = vst.msk [vmem:[%s575] ss:$2 sm:$0x3] %vm299, %v483
    %s577 = scalar_lea.vmem [#allocation10], 33
    %578 = vst.msk [vmem:[%s577] ss:$2 sm:$0x3] %vm299, %v484
    %s579 = scalar_lea.vmem [#allocation10], 37
    %580 = vst.msk [vmem:[%s579] ss:$2 sm:$0x3] %vm299, %v486
    %s581 = scalar_lea.vmem [#allocation10], 41
    %582 = vst.msk [vmem:[%s581] ss:$2 sm:$0x3] %vm299, %v488
    %s583 = scalar_lea.vmem [#allocation10], 45
    %584 = vst.msk [vmem:[%s583] ss:$2 sm:$0x3] %vm299, %v490
    %s585 = scalar_lea.vmem [#allocation10], 49
    %586 = vst.msk [vmem:[%s585] ss:$2 sm:$0x3] %vm299, %v492
    %s587 = scalar_lea.vmem [#allocation10], 53
    %588 = vst.msk [vmem:[%s587] ss:$2 sm:$0x3] %vm299, %v494
    %s589 = scalar_lea.vmem [#allocation10], 57
    %590 = vst.msk [vmem:[%s589] ss:$2 sm:$0x3] %vm299, %v496
    %s591 = scalar_lea.vmem [#allocation10], 61
    %592 = vst.msk [vmem:[%s591] ss:$2 sm:$0x3] %vm299, %v498
    %s593 = scalar_lea.vmem [#allocation10], 65
    %594 = vst.msk [vmem:[%s593] ss:$2 sm:$0x3] %vm299, %v499
    %s595 = scalar_lea.vmem [#allocation10], 69
    %596 = vst.msk [vmem:[%s595] ss:$2 sm:$0x3] %vm299, %v501
    %s597 = scalar_lea.vmem [#allocation10], 73
    %598 = vst.msk [vmem:[%s597] ss:$2 sm:$0x3] %vm299, %v503
    %s599 = scalar_lea.vmem [#allocation10], 77
    %600 = vst.msk [vmem:[%s599] ss:$2 sm:$0x3] %vm299, %v505
    %s601 = scalar_lea.vmem [#allocation10], 81
    %602 = vst.msk [vmem:[%s601] ss:$2 sm:$0x3] %vm299, %v507
    %s603 = scalar_lea.vmem [#allocation10], 85
    %604 = vst.msk [vmem:[%s603] ss:$2 sm:$0x3] %vm299, %v509
    %s605 = scalar_lea.vmem [#allocation10], 89
    %606 = vst.msk [vmem:[%s605] ss:$2 sm:$0x3] %vm299, %v511
    %s607 = scalar_lea.vmem [#allocation10], 93
    %608 = vst.msk [vmem:[%s607] ss:$2 sm:$0x3] %vm299, %v513
    %s609 = scalar_lea.vmem [#allocation10], 97
    %610 = vst.msk [vmem:[%s609] ss:$2 sm:$0x3] %vm299, %v514
    %s611 = scalar_lea.vmem [#allocation10], 101
    %612 = vst.msk [vmem:[%s611] ss:$2 sm:$0x3] %vm299, %v516
    %s613 = scalar_lea.vmem [#allocation10], 105
    %614 = vst.msk [vmem:[%s613] ss:$2 sm:$0x3] %vm299, %v518
    %s615 = scalar_lea.vmem [#allocation10], 109
    %616 = vst.msk [vmem:[%s615] ss:$2 sm:$0x3] %vm299, %v520
    %s617 = scalar_lea.vmem [#allocation10], 113
    %618 = vst.msk [vmem:[%s617] ss:$2 sm:$0x3] %vm299, %v522
    %s619 = scalar_lea.vmem [#allocation10], 117
    %620 = vst.msk [vmem:[%s619] ss:$2 sm:$0x3] %vm299, %v524
    %s621 = scalar_lea.vmem [#allocation10], 121
    %622 = vst.msk [vmem:[%s621] ss:$2 sm:$0x3] %vm299, %v526
    %s623 = scalar_lea.vmem [#allocation10], 125
    %624 = vst.msk [vmem:[%s623] ss:$2 sm:$0x3] %vm299, %v528
    // Predicated region
    $region38: #{tpu_custom_call.1} parent=1 // pred_check
      _
    $region39: #{tpu_custom_call.1} parent=1 // pred_check_branch
      %626 = sbr.rel (0) target = $region41
    $region40: #{tpu_custom_call.1} parent=1 // pred_region
      %628 = vsyncadd [#allocation4], 0
      %s629 = sshll.u32 [#allocation10], 4
      %s630 = int_to_ptr.vmem [resolvable:$true] %s629
      %s631 = sshll.u32 %s5, 4
      %s632 = int_to_ptr.hbm [resolvable:$true] %s631
      %637 = dma.vmem_to_hbm [thread:$0]  %s630, 2048, %s632, [#allocation4], 64, 64, 4
    $region41: #{tpu_custom_call.1} parent=1 // pred_fallthru
      _
    // Predicated region
    $region42: #{tpu_custom_call.1} parent=1 // pred_check
      _
    $region43: #{tpu_custom_call.1} parent=1 // pred_check_branch
      %639 = sbr.rel (0) target = $region45
    $region44: #{tpu_custom_call.1} parent=1 // pred_region
      %641 = dma.done [#allocation4], 2048
    $region45: #{tpu_custom_call.1} parent=1 // pred_fallthru
      _
    %642 = vsyncpa [#allocation3], 1
    %643 = vsyncpa [#allocation6], 1
    %644 = vsyncpa [#allocation9], 1
    %645 = vsyncpa [#allocation4], 1

</llo_original>
